<compile_context>
chip_gen: v5e
topology: v5e:2x2
jax: 0.10.0
libtpu: 0.0.40
codegen_flags: <defaults>
</compile_context>

<pallas_src>
import math
import functools

import jax
import jax.numpy as jnp
from jax.experimental import pallas as pl
from jax.experimental.pallas import tpu as pltpu


_VMEM_LIMIT = 64 * 1024 * 1024  # explicit scoped-VMEM budget (safe on v5e/v6e/v7x)


def _pick_tile(dim, candidates):
    """Largest candidate tile that evenly divides `dim`, else the full dim."""
    for c in candidates:
        if c <= dim and dim % c == 0:
            return c
    return dim


# ---------------------------------------------------------------------------
# Tiled linear kernel:  out = x @ w_t + b
# ---------------------------------------------------------------------------
def _linear_acc_kernel(x_ref, w_ref, b_ref, o_ref, acc_ref):
    k = pl.program_id(2)

    @pl.when(k == 0)
    def _():
        acc_ref[...] = jnp.zeros(acc_ref.shape, dtype=jnp.float32)

    acc_ref[...] += jnp.dot(x_ref[...], w_ref[...],
                            preferred_element_type=jnp.float32)

    @pl.when(k == pl.num_programs(2) - 1)
    def _():
        o_ref[...] = (acc_ref[...] + b_ref[...].astype(jnp.float32)
                      ).astype(o_ref.dtype)


def pallas_linear(x, w_t, b, *, compute_dtype=None):
    """x: (M, K), w_t: (K, N) (already-transposed torch weight), b: (N,)."""
    M, K = x.shape
    N = w_t.shape[1]
    out_dtype = x.dtype
    if compute_dtype is not None:
        x = x.astype(compute_dtype)
        w_t = w_t.astype(compute_dtype)

    tm = _pick_tile(M, (512, 256, 128, 64, 32, 16, 8))
    tn = _pick_tile(N, (512, 256, 128))
    tk = _pick_tile(K, (512, 256, 128))

    return pl.pallas_call(
        _linear_acc_kernel,
        out_shape=jax.ShapeDtypeStruct((M, N), out_dtype),
        grid=(M // tm, N // tn, K // tk),
        in_specs=[
            pl.BlockSpec((tm, tk), lambda i, j, k: (i, k)),
            pl.BlockSpec((tk, tn), lambda i, j, k: (k, j)),
            pl.BlockSpec((1, tn), lambda i, j, k: (0, j)),
        ],
        out_specs=pl.BlockSpec((tm, tn), lambda i, j, k: (i, j)),
        scratch_shapes=[pltpu.VMEM((tm, tn), jnp.float32)],
        compiler_params=pltpu.CompilerParams(
            dimension_semantics=("parallel", "parallel", "arbitrary"),
            vmem_limit_bytes=_VMEM_LIMIT,
        ),
    )(x, w_t, b.reshape(1, N))


# ---------------------------------------------------------------------------
# Attention kernels (all heads of one (batch, q-tile) per grid step)
# ---------------------------------------------------------------------------
def _flash_attn_kernel(*refs, scale, have_mask):
    # refs = q, k, v, [mask], out, m_scr, l_scr, acc_scr
    q_ref, k_ref, v_ref = refs[0], refs[1], refs[2]
    idx = 3
    m_ref = None
    if have_mask:
        m_ref = refs[idx]
        idx += 1
    o_ref = refs[idx]
    m_scr, l_scr, acc_scr = refs[idx + 1], refs[idx + 2], refs[idx + 3]

    kv = pl.program_id(2)

    @pl.when(kv == 0)
    def _():
        m_scr[...] = jnp.full(m_scr.shape, -jnp.inf, dtype=jnp.float32)
        l_scr[...] = jnp.zeros(l_scr.shape, dtype=jnp.float32)
        acc_scr[...] = jnp.zeros(acc_scr.shape, dtype=jnp.float32)

    q = q_ref[0]                                           # (H, tq, D)
    qs = (q.astype(jnp.float32) * scale).astype(q.dtype)   # scale on q, not scores
    k = k_ref[0]                                           # (H, tk, D)
    v = v_ref[0]                                           # (H, tk, D)

    s = jnp.einsum("hqd,hkd->hqk", qs, k,
                   preferred_element_type=jnp.float32)     # (H, tq, tk)
    if have_mask:
        s = s + m_ref[0]                                   # (tq, tk), bcast over H

    m_prev = m_scr[...]
    m_new = jnp.maximum(m_prev, jnp.max(s, axis=-1, keepdims=True))
    alpha = jnp.exp(m_prev - m_new)
    p = jnp.exp(s - m_new)
    l_scr[...] = alpha * l_scr[...] + jnp.sum(p, axis=-1, keepdims=True)
    acc_scr[...] = alpha * acc_scr[...] + jnp.einsum(
        "hqk,hkd->hqd", p.astype(v.dtype), v,
        preferred_element_type=jnp.float32)
    m_scr[...] = m_new

    @pl.when(kv == pl.num_programs(2) - 1)
    def _():
        o_ref[0] = (acc_scr[...] * pl.reciprocal(l_scr[...], approx=False)
                    ).astype(o_ref.dtype)


def _attn_probs_kernel(*refs, scale, have_mask):
    # refs = q, k, v, [mask], out, probs
    q_ref, k_ref, v_ref = refs[0], refs[1], refs[2]
    idx = 3
    m_ref = None
    if have_mask:
        m_ref = refs[idx]
        idx += 1
    o_ref, p_ref = refs[idx], refs[idx + 1]

    q = q_ref[0]                                           # (H, Sq, D)
    qs = (q.astype(jnp.float32) * scale).astype(q.dtype)
    k = k_ref[0]                                           # (H, Sk, D)
    v = v_ref[0]                                           # (H, Sk, D)

    s = jnp.einsum("hqd,hkd->hqk", qs, k,
                   preferred_element_type=jnp.float32)     # (H, Sq, Sk)
    if have_mask:
        s = s + m_ref[0]
    m = jnp.max(s, axis=-1, keepdims=True)
    e = jnp.exp(s - m)
    denom = jnp.sum(e, axis=-1, keepdims=True)
    probs = e * pl.reciprocal(denom, approx=False)

    p_ref[0] = probs.astype(p_ref.dtype)
    o_ref[0] = jnp.einsum("hqk,hkd->hqd", probs.astype(v.dtype), v,
                          preferred_element_type=jnp.float32
                          ).astype(o_ref.dtype)


def pallas_flash_attention(q, k, v, scale, mask=None, out_dtype=None):
    """q/k/v: (B, H, S, D); mask: (B, Sq, Sk) additive or None."""
    B, H, Sq, D = q.shape
    Sk = k.shape[2]
    out_dtype = out_dtype or q.dtype
    have_mask = mask is not None

    tq = _pick_tile(Sq, (512, 256, 128))   # q tiling bounds VMEM + megacore split
    tk = _pick_tile(Sk, (512, 256, 128))   # kv tiling bounds VMEM (v7x: 64 MiB)
    n_q = Sq // tq
    n_kv = Sk // tk

    in_specs = [
        pl.BlockSpec((1, H, tq, D), lambda b, qi, kv: (b, 0, qi, 0)),
        pl.BlockSpec((1, H, tk, D), lambda b, qi, kv: (b, 0, kv, 0)),
        pl.BlockSpec((1, H, tk, D), lambda b, qi, kv: (b, 0, kv, 0)),
    ]
    inputs = [q, k, v]
    if have_mask:
        # fetched once per (batch, q-tile) — index_map ignores head — tiled over kv
        in_specs.append(pl.BlockSpec((1, tq, tk), lambda b, qi, kv: (b, qi, kv)))
        inputs.append(mask)

    kern = functools.partial(_flash_attn_kernel, scale=scale,
                             have_mask=have_mask)
    return pl.pallas_call(
        kern,
        out_shape=jax.ShapeDtypeStruct((B, H, Sq, D), out_dtype),
        grid=(B, n_q, n_kv),
        in_specs=in_specs,
        out_specs=pl.BlockSpec((1, H, tq, D), lambda b, qi, kv: (b, 0, qi, 0)),
        scratch_shapes=[
            pltpu.VMEM((H, tq, 1), jnp.float32),   # running max
            pltpu.VMEM((H, tq, 1), jnp.float32),   # running denom
            pltpu.VMEM((H, tq, D), jnp.float32),   # output accumulator
        ],
        compiler_params=pltpu.CompilerParams(
            dimension_semantics=("parallel", "parallel", "arbitrary"),
            vmem_limit_bytes=_VMEM_LIMIT,
        ),
    )(*inputs)


def pallas_attention_with_probs(q, k, v, scale, mask=None, out_dtype=None):
    """Single-pass variant used only when output_attentions=True."""
    B, H, Sq, D = q.shape
    Sk = k.shape[2]
    out_dtype = out_dtype or q.dtype
    have_mask = mask is not None

    in_specs = [
        pl.BlockSpec((1, H, Sq, D), lambda b: (b, 0, 0, 0)),
        pl.BlockSpec((1, H, Sk, D), lambda b: (b, 0, 0, 0)),
        pl.BlockSpec((1, H, Sk, D), lambda b: (b, 0, 0, 0)),
    ]
    inputs = [q, k, v]
    if have_mask:
        in_specs.append(pl.BlockSpec((1, Sq, Sk), lambda b: (b, 0, 0)))
        inputs.append(mask)

    kern = functools.partial(_attn_probs_kernel, scale=scale,
                             have_mask=have_mask)
    out, probs = pl.pallas_call(
        kern,
        out_shape=(
            jax.ShapeDtypeStruct((B, H, Sq, D), out_dtype),
            jax.ShapeDtypeStruct((B, H, Sq, Sk), jnp.float32),
        ),
        grid=(B,),
        in_specs=in_specs,
        out_specs=(
            pl.BlockSpec((1, H, Sq, D), lambda b: (b, 0, 0, 0)),
            pl.BlockSpec((1, H, Sq, Sk), lambda b: (b, 0, 0, 0)),
        ),
        compiler_params=pltpu.CompilerParams(
            dimension_semantics=("parallel",),
            vmem_limit_bytes=_VMEM_LIMIT,
        ),
    )(*inputs)
    return out, probs


# ---------------------------------------------------------------------------
# Module: parameter init + forward
# ---------------------------------------------------------------------------
def init_mla_params(key, hidden_size, num_heads, rank_ratio=0.25,
                    dtype=jnp.float32):
    head_dim = hidden_size // num_heads
    low_rank = max(1, int(head_dim * rank_ratio))
    ks = jax.random.split(key, 10)

    def lin(kw, kb):
        # torch Linear default init: U(-1/sqrt(in), 1/sqrt(in))
        bound = 1.0 / math.sqrt(hidden_size)
        w = jax.random.uniform(kw, (hidden_size, hidden_size), dtype,
                               -bound, bound)          # (out, in) like torch
        b = jax.random.uniform(kb, (hidden_size,), dtype, -bound, bound)
        return w, b

    wq, bq = lin(ks[0], ks[1])
    wk, bk = lin(ks[2], ks[3])
    wv, bv = lin(ks[4], ks[5])
    wo, bo = lin(ks[6], ks[7])

    lim1 = math.sqrt(6.0 / (head_dim + low_rank))      # xavier_uniform_
    W1 = jax.random.uniform(ks[8], (num_heads, head_dim, low_rank), dtype,
                            -lim1, lim1)
    W2 = jax.random.uniform(ks[9], (num_heads, low_rank, head_dim), dtype,
                            -lim1, lim1)

    return dict(wq=wq, bq=bq, wk=wk, bk=bk, wv=wv, bv=bv, wo=wo, bo=bo,
                W1=W1, W2=W2, num_heads=num_heads, head_dim=head_dim)


def mla_self_attention_forward(params, hidden_states, attention_mask=None,
                               position_ids=None, past_key_value=None,
                               output_attentions=False, use_cache=False,
                               compute_dtype=None):
    """compute_dtype: set to jnp.bfloat16 on v6e/v7x for ~2x MXU throughput
    (f32 accumulation is kept); default None = exact f32 semantics."""
    del position_ids  # unused, kept for API parity
    B, S, E = hidden_states.shape
    H = params["num_heads"]
    D = params["head_dim"]

    # --- W1/W2 "orthogonality" in-place adjustment (side-effect only; does
    #     not feed the attention output). Plain JAX, mirrors the torch code.
    W1, W2 = params["W1"], params["W2"]
    W = jnp.einsum("hdr,hre->hde", W1, W2)
    I = jnp.broadcast_to(jnp.eye(D, dtype=W.dtype), W.shape)
    adj = 0.01 * (W - I)
    W1_new = W1 - jnp.einsum("hde,hre->hdr", adj, W2)
    W2_new = W2 - jnp.einsum("hdr,hde->hre", W1_new, adj)

    # --- fused q/k/v projection: single GEMM with concatenated weights.
    x2d = hidden_states.reshape(B * S, E)
    w_qkv_t = jnp.concatenate(
        [params["wq"].T, params["wk"].T, params["wv"].T], axis=1)     # (E, 3E)
    b_qkv = jnp.concatenate([params["bq"], params["bk"], params["bv"]])
    qkv = pallas_linear(x2d, w_qkv_t, b_qkv, compute_dtype=compute_dtype)

    def split_heads(t2d):
        return t2d.reshape(B, S, H, D).transpose(0, 2, 1, 3)   # (B, H, S, D)

    q = split_heads(qkv[:, :E])
    k = split_heads(qkv[:, E:2 * E])
    v = split_heads(qkv[:, 2 * E:])

    # --- KV cache (module semantics: growing concat along the seq axis).
    # TODO(synk): for decode, use a preallocated cache + in-place update with
    #             input_output_aliases so only the new S rows are written.
    if past_key_value is not None:
        past_k, past_v = past_key_value
        k = jnp.concatenate([past_k, k], axis=2)
        v = jnp.concatenate([past_v, v], axis=2)
    new_past = (k, v) if use_cache else past_key_value

    Sk = k.shape[2]
    mask = None
    if attention_mask is not None:
        mask = jnp.broadcast_to(attention_mask.astype(jnp.float32),
                                (B, 1, S, Sk)).reshape(B, S, Sk)

    scale = 1.0 / math.sqrt(D)
    if compute_dtype is not None:
        q_c, k_c, v_c = (t.astype(compute_dtype) for t in (q, k, v))
    else:
        q_c, k_c, v_c = q, k, v

    if output_attentions:
        attn, probs = pallas_attention_with_probs(
            q_c, k_c, v_c, scale, mask=mask, out_dtype=hidden_states.dtype)
    else:
        attn = pallas_flash_attention(
            q_c, k_c, v_c, scale, mask=mask, out_dtype=hidden_states.dtype)
        probs = None

    # --- merge heads + output projection (tiled Pallas GEMM).
    attn2d = attn.transpose(0, 2, 1, 3).reshape(B * S, H * D)
    out = pallas_linear(attn2d, params["wo"].T, params["bo"],
                        compute_dtype=compute_dtype)
    out = out.reshape(B, S, E)

    return out, probs, new_past, (W1_new, W2_new)


# ---------------------------------------------------------------------------
# Pure-JAX reference (mirrors the torch module) for correctness checking
# ---------------------------------------------------------------------------
def mla_reference(params, x, attention_mask=None):
    B, S, E = x.shape
    H, D = params["num_heads"], params["head_dim"]

    def lin(t, w, b):
        return t @ w.T + b

    q = lin(x, params["wq"], params["bq"]).reshape(B, S, H, D).transpose(0, 2, 1, 3)
    k = lin(x, params["wk"], params["bk"]).reshape(B, S, H, D).transpose(0, 2, 1, 3)
    v = lin(x, params["wv"], params["bv"]).reshape(B, S, H, D).transpose(0, 2, 1, 3)
    scores = jnp.einsum("bhqd,bhkd->bhqk", q, k) / math.sqrt(D)
    if attention_mask is not None:
        scores = scores + attention_mask
    probs = jax.nn.softmax(scores, axis=-1)
    out = jnp.einsum("bhqk,bhkd->bhqd", probs, v)
    out = out.transpose(0, 2, 1, 3).reshape(B, S, H * D)
    return lin(out, params["wo"], params["bo"]), probs


# ---------------------------------------------------------------------------
# Main
# ---------------------------------------------------------------------------
if __name__ == "__main__":
    B, S, E, H = 2, 8, 32, 4   # batch, seq, hidden, heads (head_dim = 8)

    key = jax.random.PRNGKey(0)
    k_param, k_x = jax.random.split(key)
    params = init_mla_params(k_param, hidden_size=E, num_heads=H,
                             rank_ratio=0.25)
    x = jax.random.normal(k_x, (B, S, E), dtype=jnp.float32)

    # Path 1: no mask, probs requested (single-pass kernel), cache returned.
    out1, probs1, pkv1, (W1n, W2n) = mla_self_attention_forward(
        params, x, attention_mask=None, output_attentions=True, use_cache=True)

    # Path 2: causal additive mask, default flash (q/kv-tiled) kernel, no probs.
    causal = jnp.where(jnp.tril(jnp.ones((S, S), dtype=jnp.float32)) > 0,
                       0.0, -1e9).astype(jnp.float32)[None, None]
    out2, probs2, pkv2, _ = mla_self_attention_forward(
        params, x, attention_mask=causal, output_attentions=False,
        use_cache=False)

    jax.block_until_ready(out1)
    jax.block_until_ready(probs1)
    jax.block_until_ready(pkv1)
    jax.block_until_ready(out2)
    jax.block_until_ready(W1n)
    jax.block_until_ready(W2n)

    # Shape checks (module semantics).
    assert out1.shape == (B, S, E)
    assert probs1.shape == (B, H, S, S)
    assert pkv1[0].shape == (B, H, S, E // H)
    assert out2.shape == (B, S, E)
    assert probs2 is None and pkv2 is None

    # Numerical checks against the pure-JAX reference.
    ref_out1, ref_probs1 = mla_reference(params, x, None)
    ref_out2, _ = mla_reference(params, x, causal)
    assert float(jnp.max(jnp.abs(out1 - ref_out1))) < 1e-3
    assert float(jnp.max(jnp.abs(probs1 - ref_probs1))) < 1e-3
    assert float(jnp.max(jnp.abs(out2 - ref_out2))) < 1e-3

    print("KERNEL_OK")
</pallas_src>

<mosaic_0001>
module attributes {stable_mosaic.version = 11 : i64} {
  func.func @_linear_acc_kernel(%arg0: i32, %arg1: i32, %arg2: i32, %arg3: memref<16x32xf32, #tpu.memory_space<vmem>>, %arg4: memref<32x96xf32, #tpu.memory_space<vmem>>, %arg5: memref<1x96xf32, #tpu.memory_space<vmem>>, %arg6: memref<16x96xf32, #tpu.memory_space<vmem>>, %arg7: memref<16x96xf32, #tpu.memory_space<vmem>>) attributes {dimension_semantics = [#tpu.dimension_semantics<parallel>, #tpu.dimension_semantics<parallel>, #tpu.dimension_semantics<arbitrary>], iteration_bounds = array<i64: 1, 1, 1>, scalar_prefetch = 0 : i64, scratch_operands = 1 : i64, tpu.core_type = #tpu.core_type<tc>, window_params = [{transform_indices = @transform_0, window_bounds = array<i64: 16, 32>}, {transform_indices = @transform_1, window_bounds = array<i64: 32, 96>}, {transform_indices = @transform_2, window_bounds = array<i64: 1, 96>}, {transform_indices = @transform_3, window_bounds = array<i64: 16, 96>}]} {
    %c0_i32 = arith.constant 0 : i32
    %0 = arith.cmpi eq, %arg2, %c0_i32 : i32
    %1 = arith.extui %0 : i1 to i32
    %c0_i32_0 = arith.constant 0 : i32
    %2 = arith.cmpi ne, %1, %c0_i32_0 : i32
    scf.if %2 {
      %cst_10 = arith.constant 0.000000e+00 : f32
      %12 = vector.broadcast %cst_10 : f32 to vector<16x96xf32>
      %c0_11 = arith.constant 0 : index
      %c0_12 = arith.constant 0 : index
      %13 = vector.load %arg7[%c0_11, %c0_12] : memref<16x96xf32, #tpu.memory_space<vmem>>, vector<16x96xf32>
      tpu.vector_store %arg7[%c0_11, %c0_12], %12 {strides = array<i32>} : memref<16x96xf32, #tpu.memory_space<vmem>>, vector<16x96xf32>,
    } else {
    }
    %c0 = arith.constant 0 : index
    %c0_1 = arith.constant 0 : index
    %3 = vector.load %arg7[%c0, %c0_1] : memref<16x96xf32, #tpu.memory_space<vmem>>, vector<16x96xf32>
    %c0_2 = arith.constant 0 : index
    %c0_3 = arith.constant 0 : index
    %4 = vector.load %arg3[%c0_2, %c0_3] : memref<16x32xf32, #tpu.memory_space<vmem>>, vector<16x32xf32>
    %c0_4 = arith.constant 0 : index
    %c0_5 = arith.constant 0 : index
    %5 = vector.load %arg4[%c0_4, %c0_5] : memref<32x96xf32, #tpu.memory_space<vmem>>, vector<32x96xf32>
    %cst = arith.constant dense<0.000000e+00> : vector<16x96xf32>
    %6 = tpu.matmul %4, %5, %cst {dimension_numbers = #tpu.dot_dimension_numbers<[1], [0], [0], [1], [0, 0, 1, 1], [], []>} : vector<16x32xf32>, vector<32x96xf32>, vector<16x96xf32> -> vector<16x96xf32>
    %7 = arith.addf %3, %6 : vector<16x96xf32>
    %c0_6 = arith.constant 0 : index
    %c0_7 = arith.constant 0 : index
    %8 = vector.load %arg7[%c0_6, %c0_7] : memref<16x96xf32, #tpu.memory_space<vmem>>, vector<16x96xf32>
    tpu.vector_store %arg7[%c0_6, %c0_7], %7 {strides = array<i32>} : memref<16x96xf32, #tpu.memory_space<vmem>>, vector<16x96xf32>,
    %c0_i32_8 = arith.constant 0 : i32
    %9 = arith.cmpi eq, %arg2, %c0_i32_8 : i32
    %10 = arith.extui %9 : i1 to i32
    %c0_i32_9 = arith.constant 0 : i32
    %11 = arith.cmpi ne, %10, %c0_i32_9 : i32
    scf.if %11 {
      %c0_10 = arith.constant 0 : index
      %c0_11 = arith.constant 0 : index
      %12 = vector.load %arg7[%c0_10, %c0_11] : memref<16x96xf32, #tpu.memory_space<vmem>>, vector<16x96xf32>
      %c0_12 = arith.constant 0 : index
      %c0_13 = arith.constant 0 : index
      %13 = vector.load %arg5[%c0_12, %c0_13] : memref<1x96xf32, #tpu.memory_space<vmem>>, vector<1x96xf32>
      %14 = vector.broadcast %13 : vector<1x96xf32> to vector<16x96xf32>
      %15 = arith.addf %12, %14 : vector<16x96xf32>
      %c0_14 = arith.constant 0 : index
      %c0_15 = arith.constant 0 : index
      %16 = vector.load %arg6[%c0_14, %c0_15] : memref<16x96xf32, #tpu.memory_space<vmem>>, vector<16x96xf32>
      tpu.vector_store %arg6[%c0_14, %c0_15], %15 {strides = array<i32>} : memref<16x96xf32, #tpu.memory_space<vmem>>, vector<16x96xf32>,
    } else {
    }
    return
  }
  func.func @transform_0(%arg0: i32, %arg1: i32, %arg2: i32) -> (i32, i32) {
    %c0_i32 = arith.constant 0 : i32
    return %arg0, %arg2 : i32, i32
  }
  func.func @transform_1(%arg0: i32, %arg1: i32, %arg2: i32) -> (i32, i32) {
    %c0_i32 = arith.constant 0 : i32
    return %arg2, %arg1 : i32, i32
  }
  func.func @transform_2(%arg0: i32, %arg1: i32, %arg2: i32) -> (i32, i32) {
    %c0_i32 = arith.constant 0 : i32
    %c0_i32_0 = arith.constant 0 : i32
    return %c0_i32, %arg1 : i32, i32
  }
  func.func @transform_3(%arg0: i32, %arg1: i32, %arg2: i32) -> (i32, i32) {
    %c0_i32 = arith.constant 0 : i32
    return %arg0, %arg1 : i32, i32
  }
}

</mosaic_0001>

<llo_original>
// kernel: tpu_custom_call.1
$region0: #{tpu_custom_call.1}
  #allocation0 [shape = 'u32[]', space=smem, size = 0x4, offset = 0x4, fixed_abs, tag = 'smem constant byte address 0x4 - core index']
  #allocation1 [shape = 'u32[72,128]{1,0:T(1,128)}', space=vmem, size = 0x9000, scoped, tag = 'internal scratch']
  #allocation2 [shape = 'f32[16,96]{1,0:T(8,128)}', space=vmem, size = 0x2000, scoped, tag = 'scratch operand']
  %s0 = inlined_call_operand.hbm [shape: f32[16,32], index: 0, kind: input, shape index: {}]
  %s1 = inlined_call_operand.hbm [shape: f32[32,96], index: 1, kind: input, shape index: {}]
  %s2 = inlined_call_operand.vmem [shape: f32[1,96], index: 2, kind: input, shape index: {}]
  %s3 = inlined_call_operand.hbm [shape: f32[16,96], index: 3, kind: output, shape index: {}]
  %s4 = sld [smem:[#allocation0]]
  $region38: #{tpu_custom_call.1} parent=0
    _
  %s6 = ssub.s32 1, %s4
  %s7 = scalar_select 0, %s6, %s4
  $region1: #{tpu_custom_call.1} parent=0
    #allocation3 [shape = 'u8[8192]{0}', space=vmem, size = 0x2000, scoped, tag = 'input window, operand 0, single buffered']
    #allocation4 [shape = 's32[1]{0}', space=sflag, size = 0x4, scoped, tag = 'scoped memory for tpu_custom_call.1']
    #allocation5 [shape = 's32[1]{0}', space=sflag, size = 0x4, scoped, tag = 'scoped memory for tpu_custom_call.1']
    #allocation6 [shape = 'u8[16384]{0}', space=vmem, size = 0x4000, scoped, tag = 'input window, operand 1, single buffered']
    #allocation7 [shape = 's32[1]{0}', space=sflag, size = 0x4, scoped, tag = 'scoped memory for tpu_custom_call.1']
    #allocation8 [shape = 'u8[8192]{0}', space=vmem, size = 0x2000, scoped, tag = 'output window, operand 0, single buffered']
    %8 = vsyncpa [#allocation4], 0
    %9 = vsyncpa [#allocation7], 0
    %10 = vsyncpa [#allocation5], 0
    // Predicated region
    $region2: #{tpu_custom_call.1} parent=1 // pred_check
      _
    $region3: #{tpu_custom_call.1} parent=1 // pred_check_branch
      %12 = sbr.rel (0) target = $region5
    $region4: #{tpu_custom_call.1} parent=1 // pred_region
      %14 = vsyncadd [#allocation4], 0
      %s15 = sshll.u32 %s0, 4
      %s16 = int_to_ptr.hbm [resolvable:$true] %s15
      %s17 = sshll.u32 [#allocation3], 4
      %s18 = int_to_ptr.vmem [resolvable:$true] %s17
      %23 = dma.hbm_to_vmem [thread:$0]  %s16, 256, %s18, [#allocation4], 128, 128, 8
    $region5: #{tpu_custom_call.1} parent=1 // pred_fallthru
      _
    // Predicated region
    $region6: #{tpu_custom_call.1} parent=1 // pred_check
      _
    $region7: #{tpu_custom_call.1} parent=1 // pred_check_branch
      %25 = sbr.rel (0) target = $region9
    $region8: #{tpu_custom_call.1} parent=1 // pred_region
      %27 = vsyncadd [#allocation7], 0
      %s28 = sshll.u32 %s1, 4
      %s29 = int_to_ptr.hbm [resolvable:$true] %s28
      %s30 = sshll.u32 [#allocation6], 4
      %s31 = int_to_ptr.vmem [resolvable:$true] %s30
      %36 = dma.hbm_to_vmem [thread:$0]  %s29, 512, %s31, [#allocation7], 128, 128, 8
    $region9: #{tpu_custom_call.1} parent=1 // pred_fallthru
      _
    // Predicated region
    $region10: #{tpu_custom_call.1} parent=1 // pred_check
      _
    $region11: #{tpu_custom_call.1} parent=1 // pred_check_branch
      %38 = sbr.rel (0) target = $region13
    $region12: #{tpu_custom_call.1} parent=1 // pred_region
      _
    $region13: #{tpu_custom_call.1} parent=1 // pred_fallthru
      _
    // Predicated region
    $region14: #{tpu_custom_call.1} parent=1 // pred_check
      _
    $region15: #{tpu_custom_call.1} parent=1 // pred_check_branch
      %40 = sbr.rel (0) target = $region17
    $region16: #{tpu_custom_call.1} parent=1 // pred_region
      %42 = dma.done [#allocation4], 256
    $region17: #{tpu_custom_call.1} parent=1 // pred_fallthru
      _
    // Predicated region
    $region18: #{tpu_custom_call.1} parent=1 // pred_check
      _
    $region19: #{tpu_custom_call.1} parent=1 // pred_check_branch
      %44 = sbr.rel (0) target = $region21
    $region20: #{tpu_custom_call.1} parent=1 // pred_region
      %46 = dma.done [#allocation7], 512
    $region21: #{tpu_custom_call.1} parent=1 // pred_fallthru
      _
    %p47 = scmp.eq.s32.totalorder 0, 0
    // Predicated region
    $region22: #{tpu_custom_call.1} parent=1 // pred_check
      %p48 = pneg %p47
    $region23: #{tpu_custom_call.1} parent=1 // pred_check_branch
      %50 = sbr.rel (%p48) target = $region25
    $region24: #{tpu_custom_call.1} parent=1 // pred_region
      %vm51 = vcmask 785408
      %52 = vst.msk [vmem:[#allocation2] sm:$0xff] %vm51, 0.0
      %53 = vst.msk [vmem:[#allocation2 + $0x8] sm:$0xff] %vm51, 0.0
    $region25: #{tpu_custom_call.1} parent=1 // pred_fallthru
      _
    %v54 = vld [vmem:[#allocation2] sm:$0xff]
    %v55 = vld [vmem:[#allocation2 + $0x8] sm:$0xff]
    %v56 = vld [vmem:[#allocation3] sm:$0xff]
    %v57 = vld [vmem:[#allocation3 + $0x8] sm:$0xff]
    %v58 = vld [vmem:[#allocation6] sm:$0xff]
    %v59 = vld [vmem:[#allocation6 + $0x8] sm:$0xff]
    %v60 = vld [vmem:[#allocation6 + $0x10] sm:$0xff]
    %v61 = vld [vmem:[#allocation6 + $0x18] sm:$0xff]
    %vm62 = vcmask 261120
    %v64 = vsel %vm62, %v56, 0
    %v67 = vsel %vm62, %v57, 0
    %69 = vmatpush.msra.mxu0 0.0
    %70 = vmatpush.msra.mxu0 0.0
    %71 = vmatpush.msra.mxu0 0.0
    %72 = vmatpush.msra.mxu0 0.0
    %73 = vmatpush.msra.mxu0 0.0
    %74 = vmatpush.msra.mxu0 0.0
    %75 = vmatpush.msra.mxu0 0.0
    %76 = vmatpush.msra.mxu0 0.0
    %77 = vmatpush.msra.mxu0 0.0
    %78 = vmatpush.msra.mxu0 0.0
    %79 = vmatpush.msra.mxu0 0.0
    %80 = vmatpush.msra.mxu0 0.0
    %81 = vmatpush.msra.mxu0 %v61
    %82 = vmatpush.msra.mxu0 %v60
    %83 = vmatpush.msra.mxu0 %v59
    %84 = vmatpush.msra.mxu0 %v58
    %85 = vmatmul.f32.gmra.mxu0 %v64
    %v86 = vpop.f32.mrf.mxu0
    %v87 = vadd.f32 0.0, %v86
    %88 = vmatmul.f32.gmra.mxu0 %v67
    %v89 = vpop.f32.mrf.mxu0
    %v90 = vadd.f32 0.0, %v89
    %91 = vdwg.mxu0
    %v92 = vadd.f32 %v54, %v87
    %v93 = vadd.f32 %v55, %v90
    %vm94 = vcmask 785408
    %95 = vst.msk [vmem:[#allocation2] sm:$0xff] %vm94, %v92
    %96 = vst.msk [vmem:[#allocation2 + $0x8] sm:$0xff] %vm94, %v93
    // Predicated region
    $region26: #{tpu_custom_call.1} parent=1 // pred_check
      %p97 = pneg %p47
    $region27: #{tpu_custom_call.1} parent=1 // pred_check_branch
      %99 = sbr.rel (%p97) target = $region29
    $region28: #{tpu_custom_call.1} parent=1 // pred_region
      %v100 = vld [vmem:[#allocation2] sm:$0xff]
      %v101 = vld [vmem:[#allocation2 + $0x8] sm:$0xff]
      %v102 = vld [vmem:[%s2] sm:$0x1]
      %v104 = vperm.slane %v102, 0
      %v106 = vadd.f32 %v100, %v104
      %v107 = vadd.f32 %v101, %v104
      %108 = vst.msk [vmem:[#allocation8] sm:$0xff] %vm94, %v106
      %109 = vst.msk [vmem:[#allocation8 + $0x8] sm:$0xff] %vm94, %v107
    $region29: #{tpu_custom_call.1} parent=1 // pred_fallthru
      _
    // Predicated region
    $region30: #{tpu_custom_call.1} parent=1 // pred_check
      _
    $region31: #{tpu_custom_call.1} parent=1 // pred_check_branch
      %111 = sbr.rel (0) target = $region33
    $region32: #{tpu_custom_call.1} parent=1 // pred_region
      %113 = vsyncadd [#allocation5], 0
      %s114 = sshll.u32 [#allocation8], 4
      %s115 = int_to_ptr.vmem [resolvable:$true] %s114
      %s116 = sshll.u32 %s3, 4
      %s117 = int_to_ptr.hbm [resolvable:$true] %s116
      %122 = dma.vmem_to_hbm [thread:$0]  %s115, 256, %s117, [#allocation5], 128, 128, 8
    $region33: #{tpu_custom_call.1} parent=1 // pred_fallthru
      _
    // Predicated region
    $region34: #{tpu_custom_call.1} parent=1 // pred_check
      _
    $region35: #{tpu_custom_call.1} parent=1 // pred_check_branch
      %124 = sbr.rel (0) target = $region37
    $region36: #{tpu_custom_call.1} parent=1 // pred_region
      %126 = dma.done [#allocation5], 256
    $region37: #{tpu_custom_call.1} parent=1 // pred_fallthru
      _
    %127 = vsyncpa [#allocation4], 1
    %128 = vsyncpa [#allocation7], 1
    %129 = vsyncpa [#allocation5], 1

</llo_original>
